<compile_context>
chip_gen: v5e
topology: v5e:2x2
jax: 0.10.0
libtpu: 0.0.40
codegen_flags: <defaults>
</compile_context>

<pallas_src>
import functools
import math

import jax
import jax.numpy as jnp
from jax.experimental import pallas as pl
from jax.experimental.pallas import tpu as pltpu


# ---------------------------------------------------------------------------
# Kernel 1: fused Q/K/V linear projections (scale folded into Q).
# ---------------------------------------------------------------------------
def _qkv_projection_kernel(x_ref, wq_ref, bq_ref, wk_ref, bk_ref, wv_ref,
                           bv_ref, q_ref, k_ref, v_ref, *, scale):
    x = x_ref[...]                                            # (ts, d_in)
    q = jnp.dot(x, wq_ref[...], preferred_element_type=jnp.float32) + bq_ref[...]
    q_ref[...] = (q * scale).astype(q_ref.dtype)              # fold 1/sqrt(d_out)
    k = jnp.dot(x, wk_ref[...], preferred_element_type=jnp.float32) + bk_ref[...]
    k_ref[...] = k.astype(k_ref.dtype)
    v = jnp.dot(x, wv_ref[...], preferred_element_type=jnp.float32) + bv_ref[...]
    v_ref[...] = v.astype(v_ref.dtype)


def _project_qkv(x, wq, bq, wk, bk, wv, bv, *, ts):
    B, S, d_in = x.shape
    d_out = wq.shape[1]
    scale = 1.0 / math.sqrt(d_out)

    kernel = functools.partial(_qkv_projection_kernel, scale=scale)

    x_spec = pl.BlockSpec((pl.Squeezed(), ts, d_in), lambda b, i: (b, i, 0))
    o_spec = pl.BlockSpec((pl.Squeezed(), ts, d_out), lambda b, i: (b, i, 0))
    w_spec = pl.BlockSpec((d_in, d_out), lambda b, i: (0, 0))
    b_spec = pl.BlockSpec((1, d_out), lambda b, i: (0, 0))

    out_sds = jax.ShapeDtypeStruct((B, S, d_out), x.dtype)
    return pl.pallas_call(
        kernel,
        out_shape=(out_sds, out_sds, out_sds),
        grid_spec=pltpu.PrefetchScalarGridSpec(
            num_scalar_prefetch=0,
            grid=(B, S // ts),
            in_specs=[x_spec, w_spec, b_spec, w_spec, b_spec, w_spec, b_spec],
            out_specs=(o_spec, o_spec, o_spec),
        ),
        compiler_params=pltpu.CompilerParams(
            dimension_semantics=("parallel", "parallel"),
            vmem_limit_bytes=32 * 1024 * 1024,
        ),
    )(x, wq, bq, wk, bk, wv, bv)


# ---------------------------------------------------------------------------
# Kernel 2: flash-attention (online softmax over key tiles).
# ---------------------------------------------------------------------------
def _flash_attention_kernel(q_ref, k_ref, v_ref, o_ref, m_sc, l_sc, acc_sc):
    ki = pl.program_id(2)

    @pl.when(ki == 0)
    def _init():
        m_sc[...] = jnp.full(m_sc.shape, -jnp.inf, jnp.float32)
        l_sc[...] = jnp.zeros(l_sc.shape, jnp.float32)
        acc_sc[...] = jnp.zeros(acc_sc.shape, jnp.float32)

    # (tq, tk) scores; contract last dims of q and k directly on the MXU
    # (no materialized k transpose). Q already carries the 1/sqrt(d_out) scale.
    s = jax.lax.dot_general(
        q_ref[...], k_ref[...],
        dimension_numbers=(((1,), (1,)), ((), ())),
        preferred_element_type=jnp.float32)

    m_prev = m_sc[...]
    m_new = jnp.maximum(m_prev, jnp.max(s, axis=-1, keepdims=True))
    alpha = jnp.exp(m_prev - m_new)          # == 0 on the first key tile
    p = jnp.exp(s - m_new)

    l_sc[...] = alpha * l_sc[...] + jnp.sum(p, axis=-1, keepdims=True)
    acc_sc[...] = alpha * acc_sc[...] + jnp.dot(
        p.astype(v_ref.dtype), v_ref[...], preferred_element_type=jnp.float32)
    m_sc[...] = m_new

    @pl.when(ki == pl.num_programs(2) - 1)
    def _finalize():
        inv_l = pl.reciprocal(l_sc[...], approx=True)   # EUP slot, ~free
        o_ref[...] = (acc_sc[...] * inv_l).astype(o_ref.dtype)


def _flash_attention(q, k, v, *, tq, tk):
    B, S, d_out = q.shape

    q_spec = pl.BlockSpec((pl.Squeezed(), tq, d_out), lambda b, qi, ki: (b, qi, 0))
    kv_spec = pl.BlockSpec((pl.Squeezed(), tk, d_out), lambda b, qi, ki: (b, ki, 0))
    o_spec = pl.BlockSpec((pl.Squeezed(), tq, d_out), lambda b, qi, ki: (b, qi, 0))

    # Advisory cost hint for XLA's scheduler around the custom call.
    flops = 2 * B * S * S * d_out * 2            # QK^T + PV
    cost = pl.CostEstimate(
        flops=flops,
        transcendentals=B * S * S,               # exp per score element
        bytes_accessed=(3 * B * S * d_out + B * S * d_out) * q.dtype.itemsize,
    )

    return pl.pallas_call(
        _flash_attention_kernel,
        out_shape=jax.ShapeDtypeStruct((B, S, d_out), q.dtype),
        grid_spec=pltpu.PrefetchScalarGridSpec(
            num_scalar_prefetch=0,
            grid=(B, S // tq, S // tk),
            in_specs=[q_spec, kv_spec, kv_spec],
            out_specs=o_spec,
            scratch_shapes=[
                pltpu.VMEM((tq, 1), jnp.float32),      # running max m
                pltpu.VMEM((tq, 1), jnp.float32),      # running sum l
                pltpu.VMEM((tq, d_out), jnp.float32),  # output accumulator
            ],
        ),
        compiler_params=pltpu.CompilerParams(
            # B and q-tiles parallel (megacore sharding), key axis is the
            # reduction -> "arbitrary" with resident accumulators.
            dimension_semantics=("parallel", "parallel", "arbitrary"),
            vmem_limit_bytes=32 * 1024 * 1024,
        ),
        cost_estimate=cost,
    )(q, k, v)


# ---------------------------------------------------------------------------
# Public wrapper.
# ---------------------------------------------------------------------------
def _pick_tile(extent, candidates=(512, 256, 128)):
    for c in candidates:
        if extent >= c and extent % c == 0:
            return c
    return extent  # full extent (legal: block dim == array dim)


def attention_pallas(x, wq, bq, wk, bk, wv, bv, *, tq=None, tk=None):
    """x: (B, S, d_in); w*: (d_in, d_out); b*: (1, d_out). Returns (B, S, d_out)."""
    B, S, d_in = x.shape
    tq = tq if tq is not None else _pick_tile(S, (256, 128))
    tk = tk if tk is not None else _pick_tile(S, (512, 256, 128))
    ts = _pick_tile(S)
    q, k, v = _project_qkv(x, wq, bq, wk, bk, wv, bv, ts=ts)
    return _flash_attention(q, k, v, tq=tq, tk=tk)


# ---------------------------------------------------------------------------
# Pure-JAX reference (f32-exact matmuls so the comparison isolates kernel error).
# ---------------------------------------------------------------------------
def attention_reference(x, wq, bq, wk, bk, wv, bv):
    hi = jax.lax.Precision.HIGHEST
    d_out = wq.shape[1]
    q = jnp.einsum("bsi,io->bso", x, wq, precision=hi) + bq
    k = jnp.einsum("bsi,io->bso", x, wk, precision=hi) + bk
    v = jnp.einsum("bsi,io->bso", x, wv, precision=hi) + bv
    scores = jnp.einsum("bqd,bkd->bqk", q, k, precision=hi) / math.sqrt(d_out)
    attn = jax.nn.softmax(scores, axis=-1)
    return jnp.einsum("bqk,bkd->bqd", attn, v, precision=hi)


if __name__ == "__main__":
    # Small but tiling-exercising shapes: 2 batches, 256 tokens, d_in=32,
    # d_out=128 (lane-dense output). tq=tk=128 forces multiple key tiles so the
    # online-softmax accumulation path is actually exercised.
    B, S, d_in, d_out = 2, 256, 32, 128

    key = jax.random.PRNGKey(0)
    kx, kq, kbq, kk, kbk, kv, kbv = jax.random.split(key, 7)

    x = jax.random.normal(kx, (B, S, d_in), dtype=jnp.float32)

    # Mimic nn.Linear's uniform(-1/sqrt(d_in), 1/sqrt(d_in)) init.
    bound = 1.0 / math.sqrt(d_in)
    init_w = lambda k: jax.random.uniform(k, (d_in, d_out), jnp.float32, -bound, bound)
    init_b = lambda k: jax.random.uniform(k, (1, d_out), jnp.float32, -bound, bound)

    wq, bq = init_w(kq), init_b(kbq)
    wk, bk = init_w(kk), init_b(kbk)
    wv, bv = init_w(kv), init_b(kbv)

    out = attention_pallas(x, wq, bq, wk, bk, wv, bv, tq=128, tk=128)
    out = jax.block_until_ready(out)

    ref = attention_reference(x, wq, bq, wk, bk, wv, bv)
    assert out.shape == (B, S, d_out)
    # Tolerance covers the approximate (EUP) reciprocal in the final normalize.
    assert jnp.allclose(out, ref, atol=2e-3, rtol=2e-3)

    print("KERNEL_OK")
</pallas_src>

<mosaic_0001>
module attributes {stable_mosaic.version = 11 : i64} {
  func.func @_qkv_projection_kernel(%arg0: i32, %arg1: i32, %arg2: memref<1x256x32xf32, #tpu.memory_space<vmem>>, %arg3: memref<32x128xf32, #tpu.memory_space<vmem>>, %arg4: memref<1x128xf32, #tpu.memory_space<vmem>>, %arg5: memref<32x128xf32, #tpu.memory_space<vmem>>, %arg6: memref<1x128xf32, #tpu.memory_space<vmem>>, %arg7: memref<32x128xf32, #tpu.memory_space<vmem>>, %arg8: memref<1x128xf32, #tpu.memory_space<vmem>>, %arg9: memref<1x256x128xf32, #tpu.memory_space<vmem>>, %arg10: memref<1x256x128xf32, #tpu.memory_space<vmem>>, %arg11: memref<1x256x128xf32, #tpu.memory_space<vmem>>) attributes {dimension_semantics = [#tpu.dimension_semantics<parallel>, #tpu.dimension_semantics<parallel>], iteration_bounds = array<i64: 2, 1>, scalar_prefetch = 0 : i64, scratch_operands = 0 : i64, tpu.core_type = #tpu.core_type<tc>, window_params = [{transform_indices = @transform_0, window_bounds = array<i64: 1, 256, 32>}, {pipeline_mode = #tpu.pipeline_mode<synchronous>, transform_indices = @transform_1, window_bounds = array<i64: 32, 128>}, {pipeline_mode = #tpu.pipeline_mode<synchronous>, transform_indices = @transform_2, window_bounds = array<i64: 1, 128>}, {pipeline_mode = #tpu.pipeline_mode<synchronous>, transform_indices = @transform_3, window_bounds = array<i64: 32, 128>}, {pipeline_mode = #tpu.pipeline_mode<synchronous>, transform_indices = @transform_4, window_bounds = array<i64: 1, 128>}, {pipeline_mode = #tpu.pipeline_mode<synchronous>, transform_indices = @transform_5, window_bounds = array<i64: 32, 128>}, {pipeline_mode = #tpu.pipeline_mode<synchronous>, transform_indices = @transform_6, window_bounds = array<i64: 1, 128>}, {transform_indices = @transform_7, window_bounds = array<i64: 1, 256, 128>}, {transform_indices = @transform_8, window_bounds = array<i64: 1, 256, 128>}, {transform_indices = @transform_9, window_bounds = array<i64: 1, 256, 128>}]} {
    %c0 = arith.constant 0 : index
    %c0_0 = arith.constant 0 : index
    %c0_1 = arith.constant 0 : index
    %0 = vector.load %arg2[%c0, %c0_0, %c0_1] : memref<1x256x32xf32, #tpu.memory_space<vmem>>, vector<1x256x32xf32>
    %1 = vector.shape_cast %0 : vector<1x256x32xf32> to vector<256x32xf32>
    %c0_2 = arith.constant 0 : index
    %c0_3 = arith.constant 0 : index
    %2 = vector.load %arg3[%c0_2, %c0_3] : memref<32x128xf32, #tpu.memory_space<vmem>>, vector<32x128xf32>
    %cst = arith.constant dense<0.000000e+00> : vector<256x128xf32>
    %3 = tpu.matmul %1, %2, %cst {dimension_numbers = #tpu.dot_dimension_numbers<[1], [0], [0], [1], [0, 0, 1, 1], [], []>} : vector<256x32xf32>, vector<32x128xf32>, vector<256x128xf32> -> vector<256x128xf32>
    %c0_4 = arith.constant 0 : index
    %c0_5 = arith.constant 0 : index
    %4 = vector.load %arg4[%c0_4, %c0_5] : memref<1x128xf32, #tpu.memory_space<vmem>>, vector<1x128xf32>
    %5 = vector.broadcast %4 : vector<1x128xf32> to vector<256x128xf32>
    %6 = arith.addf %3, %5 : vector<256x128xf32>
    %cst_6 = arith.constant 0.0883883461 : f32
    %7 = vector.broadcast %cst_6 : f32 to vector<256x128xf32>
    %8 = arith.mulf %6, %7 : vector<256x128xf32>
    %c0_7 = arith.constant 0 : index
    %c0_8 = arith.constant 0 : index
    %c0_9 = arith.constant 0 : index
    %9 = vector.load %arg9[%c0_7, %c0_8, %c0_9] : memref<1x256x128xf32, #tpu.memory_space<vmem>>, vector<1x256x128xf32>
    %10 = vector.shape_cast %9 : vector<1x256x128xf32> to vector<256x128xf32>
    %11 = vector.shape_cast %8 : vector<256x128xf32> to vector<1x256x128xf32>
    tpu.vector_store %arg9[%c0_7, %c0_8, %c0_9], %11 {strides = array<i32>} : memref<1x256x128xf32, #tpu.memory_space<vmem>>, vector<1x256x128xf32>,
    %c0_10 = arith.constant 0 : index
    %c0_11 = arith.constant 0 : index
    %12 = vector.load %arg5[%c0_10, %c0_11] : memref<32x128xf32, #tpu.memory_space<vmem>>, vector<32x128xf32>
    %cst_12 = arith.constant dense<0.000000e+00> : vector<256x128xf32>
    %13 = tpu.matmul %1, %12, %cst_12 {dimension_numbers = #tpu.dot_dimension_numbers<[1], [0], [0], [1], [0, 0, 1, 1], [], []>} : vector<256x32xf32>, vector<32x128xf32>, vector<256x128xf32> -> vector<256x128xf32>
    %c0_13 = arith.constant 0 : index
    %c0_14 = arith.constant 0 : index
    %14 = vector.load %arg6[%c0_13, %c0_14] : memref<1x128xf32, #tpu.memory_space<vmem>>, vector<1x128xf32>
    %15 = vector.broadcast %14 : vector<1x128xf32> to vector<256x128xf32>
    %16 = arith.addf %13, %15 : vector<256x128xf32>
    %c0_15 = arith.constant 0 : index
    %c0_16 = arith.constant 0 : index
    %c0_17 = arith.constant 0 : index
    %17 = vector.load %arg10[%c0_15, %c0_16, %c0_17] : memref<1x256x128xf32, #tpu.memory_space<vmem>>, vector<1x256x128xf32>
    %18 = vector.shape_cast %17 : vector<1x256x128xf32> to vector<256x128xf32>
    %19 = vector.shape_cast %16 : vector<256x128xf32> to vector<1x256x128xf32>
    tpu.vector_store %arg10[%c0_15, %c0_16, %c0_17], %19 {strides = array<i32>} : memref<1x256x128xf32, #tpu.memory_space<vmem>>, vector<1x256x128xf32>,
    %c0_18 = arith.constant 0 : index
    %c0_19 = arith.constant 0 : index
    %20 = vector.load %arg7[%c0_18, %c0_19] : memref<32x128xf32, #tpu.memory_space<vmem>>, vector<32x128xf32>
    %cst_20 = arith.constant dense<0.000000e+00> : vector<256x128xf32>
    %21 = tpu.matmul %1, %20, %cst_20 {dimension_numbers = #tpu.dot_dimension_numbers<[1], [0], [0], [1], [0, 0, 1, 1], [], []>} : vector<256x32xf32>, vector<32x128xf32>, vector<256x128xf32> -> vector<256x128xf32>
    %c0_21 = arith.constant 0 : index
    %c0_22 = arith.constant 0 : index
    %22 = vector.load %arg8[%c0_21, %c0_22] : memref<1x128xf32, #tpu.memory_space<vmem>>, vector<1x128xf32>
    %23 = vector.broadcast %22 : vector<1x128xf32> to vector<256x128xf32>
    %24 = arith.addf %21, %23 : vector<256x128xf32>
    %c0_23 = arith.constant 0 : index
    %c0_24 = arith.constant 0 : index
    %c0_25 = arith.constant 0 : index
    %25 = vector.load %arg11[%c0_23, %c0_24, %c0_25] : memref<1x256x128xf32, #tpu.memory_space<vmem>>, vector<1x256x128xf32>
    %26 = vector.shape_cast %25 : vector<1x256x128xf32> to vector<256x128xf32>
    %27 = vector.shape_cast %24 : vector<256x128xf32> to vector<1x256x128xf32>
    tpu.vector_store %arg11[%c0_23, %c0_24, %c0_25], %27 {strides = array<i32>} : memref<1x256x128xf32, #tpu.memory_space<vmem>>, vector<1x256x128xf32>,
    return
  }
  func.func @transform_0(%arg0: i32, %arg1: i32) -> (i32, i32, i32) {
    %c0_i32 = arith.constant 0 : i32
    %c0_i32_0 = arith.constant 0 : i32
    return %arg0, %arg1, %c0_i32 : i32, i32, i32
  }
  func.func @transform_1(%arg0: i32, %arg1: i32) -> (i32, i32) {
    %c0_i32 = arith.constant 0 : i32
    %c0_i32_0 = arith.constant 0 : i32
    %c0_i32_1 = arith.constant 0 : i32
    return %c0_i32, %c0_i32_0 : i32, i32
  }
  func.func @transform_2(%arg0: i32, %arg1: i32) -> (i32, i32) {
    %c0_i32 = arith.constant 0 : i32
    %c0_i32_0 = arith.constant 0 : i32
    %c0_i32_1 = arith.constant 0 : i32
    return %c0_i32, %c0_i32_0 : i32, i32
  }
  func.func @transform_3(%arg0: i32, %arg1: i32) -> (i32, i32) {
    %c0_i32 = arith.constant 0 : i32
    %c0_i32_0 = arith.constant 0 : i32
    %c0_i32_1 = arith.constant 0 : i32
    return %c0_i32, %c0_i32_0 : i32, i32
  }
  func.func @transform_4(%arg0: i32, %arg1: i32) -> (i32, i32) {
    %c0_i32 = arith.constant 0 : i32
    %c0_i32_0 = arith.constant 0 : i32
    %c0_i32_1 = arith.constant 0 : i32
    return %c0_i32, %c0_i32_0 : i32, i32
  }
  func.func @transform_5(%arg0: i32, %arg1: i32) -> (i32, i32) {
    %c0_i32 = arith.constant 0 : i32
    %c0_i32_0 = arith.constant 0 : i32
    %c0_i32_1 = arith.constant 0 : i32
    return %c0_i32, %c0_i32_0 : i32, i32
  }
  func.func @transform_6(%arg0: i32, %arg1: i32) -> (i32, i32) {
    %c0_i32 = arith.constant 0 : i32
    %c0_i32_0 = arith.constant 0 : i32
    %c0_i32_1 = arith.constant 0 : i32
    return %c0_i32, %c0_i32_0 : i32, i32
  }
  func.func @transform_7(%arg0: i32, %arg1: i32) -> (i32, i32, i32) {
    %c0_i32 = arith.constant 0 : i32
    %c0_i32_0 = arith.constant 0 : i32
    return %arg0, %arg1, %c0_i32 : i32, i32, i32
  }
  func.func @transform_8(%arg0: i32, %arg1: i32) -> (i32, i32, i32) {
    %c0_i32 = arith.constant 0 : i32
    %c0_i32_0 = arith.constant 0 : i32
    return %arg0, %arg1, %c0_i32 : i32, i32, i32
  }
  func.func @transform_9(%arg0: i32, %arg1: i32) -> (i32, i32, i32) {
    %c0_i32 = arith.constant 0 : i32
    %c0_i32_0 = arith.constant 0 : i32
    return %arg0, %arg1, %c0_i32 : i32, i32, i32
  }
}

</mosaic_0001>

<llo_original>
// kernel: tpu_custom_call.1
$region0: #{tpu_custom_call.1}
  #allocation0 [shape = 'u32[]', space=smem, size = 0x4, offset = 0x4, fixed_abs, tag = 'smem constant byte address 0x4 - core index']
  #allocation1 [shape = 'u32[72,128]{1,0:T(1,128)}', space=vmem, size = 0x9000, scoped, tag = 'internal scratch']
  %s0 = inlined_call_operand.vmem [shape: f32[2,256,32], index: 0, kind: input, shape index: {}]
  %s1 = inlined_call_operand.vmem [shape: f32[32,128], index: 1, kind: input, shape index: {}]
  %s2 = inlined_call_operand.vmem [shape: f32[1,128], index: 2, kind: input, shape index: {}]
  %s3 = inlined_call_operand.vmem [shape: f32[32,128], index: 3, kind: input, shape index: {}]
  %s4 = inlined_call_operand.vmem [shape: f32[1,128], index: 4, kind: input, shape index: {}]
  %s5 = inlined_call_operand.vmem [shape: f32[32,128], index: 5, kind: input, shape index: {}]
  %s6 = inlined_call_operand.vmem [shape: f32[1,128], index: 6, kind: input, shape index: {}]
  %s7 = inlined_call_operand.hbm [shape: f32[2,256,128], index: 7, kind: output, shape index: {0}]
  %s8 = inlined_call_operand.hbm [shape: f32[2,256,128], index: 8, kind: output, shape index: {1}]
  %s9 = inlined_call_operand.hbm [shape: f32[2,256,128], index: 9, kind: output, shape index: {2}]
  %10 = xla_tuple %s7, %s8, %s9
  %s11 = sld [smem:[#allocation0]]
  $region77: #{tpu_custom_call.1} parent=0
    _
  %s13 = ssub.s32 1, %s11
  %s14 = scalar_select 0, %s13, %s11
  $region1: #{tpu_custom_call.1} parent=0
    #allocation2 [shape = 'u8[262144]{0}', space=vmem, size = 0x40000, scoped, tag = 'output window, operand 0']
    #allocation3 [shape = 's32[2]{0}', space=sflag, size = 0x8, scoped, tag = 'scoped memory for tpu_custom_call.1']
    #allocation4 [shape = 'u8[262144]{0}', space=vmem, size = 0x40000, scoped, tag = 'output window, operand 1']
    #allocation5 [shape = 's32[2]{0}', space=sflag, size = 0x8, scoped, tag = 'scoped memory for tpu_custom_call.1']
    #allocation6 [shape = 'u8[262144]{0}', space=vmem, size = 0x40000, scoped, tag = 'output window, operand 2']
    %15 = vsyncpa [#allocation3], 0
    %s16 = scalar_lea.sflag [#allocation3], 1
    %17 = vsyncpa %s16, 0
    %18 = vsyncpa [#allocation5], 0
    %s19 = scalar_lea.sflag [#allocation5], 1
    %20 = vsyncpa %s19, 0
    loop: start=0, step=1, limit=4
    $region2: #{tpu_custom_call.1} parent=1 // loop_pre_header
      _
    $region3: #{tpu_custom_call.1} parent=1 // loop_header
      %s22 = sphi 0, %s26
      %p23 = scmp.ge.s32.totalorder %s22, 4
      %s29 = sphi 0, %s41
      %s30 = sphi 0, %s37
      %s31 = sphi 0, %s29
      %s32 = sphi 0, %s30
      %s33 = sphi 0, %s31
      %s34 = sphi 0, %s32
      %s46 = sphi 0, %s48
      %s49 = sphi 0, %s46
      %s50 = sphi 0, %s49
      %s66 = sphi 0, %s50
      %s70 = sphi 0, %s70
      %s72 = sphi 0, %s70
      %s73 = sphi 0, %s72
      %s87 = sphi 0, %s73
      %s91 = sphi 0, %s91
      %s93 = sphi 0, %s91
      %s94 = sphi 0, %s93
      %s108 = sphi 0, %s94
      %s112 = sphi 0, %s112
      %s114 = sphi 0, %s112
      %s115 = sphi 0, %s114
      %s129 = sphi 0, %s115
      %s133 = sphi 0, %s133
      %s135 = sphi 0, %s133
      %s136 = sphi 0, %s135
      %s150 = sphi 0, %s136
      %s154 = sphi 0, %s154
      %s156 = sphi 0, %s154
      %s157 = sphi 0, %s156
      %s171 = sphi 0, %s157
      %s175 = sphi 0, %s175
      %s177 = sphi 0, %s175
      %s178 = sphi 0, %s177
      %s192 = sphi 0, %s178
      %s200 = sphi 0, %s202
      %s203 = sphi 0, %s200
      %s204 = sphi 0, %s203
      %s220 = sphi 0, %s204
      %s228 = sphi 0, %s230
      %s231 = sphi 0, %s228
      %s232 = sphi 0, %s231
      %s248 = sphi 0, %s232
      %s256 = sphi 0, %s258
      %s259 = sphi 0, %s256
      %s260 = sphi 0, %s259
      %s276 = sphi 0, %s260
    $region4: #{tpu_custom_call.1} parent=1 // loop_header_branch
      %25 = sbr.rel (%p23) target = $region8
    $region5: #{tpu_custom_call.1} parent=1 // loop_body
      %s27 = ssub.s32 %s22, 1
      %s28 = ssub.s32 %s22, 2
      %s35 = sadd.s32 1, %s30
      %p36 = scmp.ge.s32.totalorder %s35, 1
      %s37 = scalar_select %p36, 0, %s35
      %s38 = sadd.s32 1, %s29
      %s39 = scalar_select %p36, %s38, %s29
      %p40 = scmp.ge.s32.totalorder %s39, 2
      %s41 = scalar_select %p40, 0, %s39
      %s42 = ssub.s32 %s29, %s41
      %s43 = ssub.s32 %s30, %s37
      %s44 = sor.u32 %s42, %s43
      %p45 = scmp.eq.s32.totalorder %s44, 0
      %s47 = sadd.s32 %s46, 1
      %s48 = scalar_select %p45, %s46, %s47
      %p51 = pneg %p45
      %p52 = scmp.eq.s32.totalorder %s22, 1
      %p53 = por %p51, %p52
      %p54 = scmp.ne.s32.totalorder %s46, %s49
      %p55 = scmp.eq.s32.totalorder %s22, 0
      %p56 = por %p54, %p55
      %p57 = scmp.ne.s32.totalorder %s46, %s49
      %p58 = scmp.eq.s32.totalorder %s27, 1
      %p59 = por %p57, %p58
      %p60 = scmp.ne.s32.totalorder %s49, %s50
      %p61 = scmp.eq.s32.totalorder %s27, 0
      %p62 = por %p60, %p61
      %p63 = scmp.ne.s32.totalorder %s49, %s50
      %p64 = scmp.eq.s32.totalorder %s28, 1
      %p65 = por %p63, %p64
      %p67 = scmp.ne.s32.totalorder %s50, %s66
      %p68 = scmp.eq.s32.totalorder %s28, 0
      %p69 = por %p67, %p68
      %s71 = sadd.s32 %s70, 1
      %p74 = scmp.eq.s32.totalorder %s22, 1
      %p75 = scmp.ne.s32.totalorder %s70, %s72
      %p76 = scmp.eq.s32.totalorder %s22, 0
      %p77 = por %p75, %p76
      %p78 = scmp.ne.s32.totalorder %s70, %s72
      %p79 = scmp.eq.s32.totalorder %s27, 1
      %p80 = por %p78, %p79
      %p81 = scmp.ne.s32.totalorder %s72, %s73
      %p82 = scmp.eq.s32.totalorder %s27, 0
      %p83 = por %p81, %p82
      %p84 = scmp.ne.s32.totalorder %s72, %s73
      %p85 = scmp.eq.s32.totalorder %s28, 1
      %p86 = por %p84, %p85
      %p88 = scmp.ne.s32.totalorder %s73, %s87
      %p89 = scmp.eq.s32.totalorder %s28, 0
      %p90 = por %p88, %p89
      %s92 = sadd.s32 %s91, 1
      %p95 = scmp.eq.s32.totalorder %s22, 1
      %p96 = scmp.ne.s32.totalorder %s91, %s93
      %p97 = scmp.eq.s32.totalorder %s22, 0
      %p98 = por %p96, %p97
      %p99 = scmp.ne.s32.totalorder %s91, %s93
      %p100 = scmp.eq.s32.totalorder %s27, 1
      %p101 = por %p99, %p100
      %p102 = scmp.ne.s32.totalorder %s93, %s94
      %p103 = scmp.eq.s32.totalorder %s27, 0
      %p104 = por %p102, %p103
      %p105 = scmp.ne.s32.totalorder %s93, %s94
      %p106 = scmp.eq.s32.totalorder %s28, 1
      %p107 = por %p105, %p106
      %p109 = scmp.ne.s32.totalorder %s94, %s108
      %p110 = scmp.eq.s32.totalorder %s28, 0
      %p111 = por %p109, %p110
      %s113 = sadd.s32 %s112, 1
      %p116 = scmp.eq.s32.totalorder %s22, 1
      %p117 = scmp.ne.s32.totalorder %s112, %s114
      %p118 = scmp.eq.s32.totalorder %s22, 0
      %p119 = por %p117, %p118
      %p120 = scmp.ne.s32.totalorder %s112, %s114
      %p121 = scmp.eq.s32.totalorder %s27, 1
      %p122 = por %p120, %p121
      %p123 = scmp.ne.s32.totalorder %s114, %s115
      %p124 = scmp.eq.s32.totalorder %s27, 0
      %p125 = por %p123, %p124
      %p126 = scmp.ne.s32.totalorder %s114, %s115
      %p127 = scmp.eq.s32.totalorder %s28, 1
      %p128 = por %p126, %p127
      %p130 = scmp.ne.s32.totalorder %s115, %s129
      %p131 = scmp.eq.s32.totalorder %s28, 0
      %p132 = por %p130, %p131
      %s134 = sadd.s32 %s133, 1
      %p137 = scmp.eq.s32.totalorder %s22, 1
      %p138 = scmp.ne.s32.totalorder %s133, %s135
      %p139 = scmp.eq.s32.totalorder %s22, 0
      %p140 = por %p138, %p139
      %p141 = scmp.ne.s32.totalorder %s133, %s135
      %p142 = scmp.eq.s32.totalorder %s27, 1
      %p143 = por %p141, %p142
      %p144 = scmp.ne.s32.totalorder %s135, %s136
      %p145 = scmp.eq.s32.totalorder %s27, 0
      %p146 = por %p144, %p145
      %p147 = scmp.ne.s32.totalorder %s135, %s136
      %p148 = scmp.eq.s32.totalorder %s28, 1
      %p149 = por %p147, %p148
      %p151 = scmp.ne.s32.totalorder %s136, %s150
      %p152 = scmp.eq.s32.totalorder %s28, 0
      %p153 = por %p151, %p152
      %s155 = sadd.s32 %s154, 1
      %p158 = scmp.eq.s32.totalorder %s22, 1
      %p159 = scmp.ne.s32.totalorder %s154, %s156
      %p160 = scmp.eq.s32.totalorder %s22, 0
      %p161 = por %p159, %p160
      %p162 = scmp.ne.s32.totalorder %s154, %s156
      %p163 = scmp.eq.s32.totalorder %s27, 1
      %p164 = por %p162, %p163
      %p165 = scmp.ne.s32.totalorder %s156, %s157
      %p166 = scmp.eq.s32.totalorder %s27, 0
      %p167 = por %p165, %p166
      %p168 = scmp.ne.s32.totalorder %s156, %s157
      %p169 = scmp.eq.s32.totalorder %s28, 1
      %p170 = por %p168, %p169
      %p172 = scmp.ne.s32.totalorder %s157, %s171
      %p173 = scmp.eq.s32.totalorder %s28, 0
      %p174 = por %p172, %p173
      %s176 = sadd.s32 %s175, 1
      %p179 = scmp.eq.s32.totalorder %s22, 1
      %p180 = scmp.ne.s32.totalorder %s175, %s177
      %p181 = scmp.eq.s32.totalorder %s22, 0
      %p182 = por %p180, %p181
      %p183 = scmp.ne.s32.totalorder %s175, %s177
      %p184 = scmp.eq.s32.totalorder %s27, 1
      %p185 = por %p183, %p184
      %p186 = scmp.ne.s32.totalorder %s177, %s178
      %p187 = scmp.eq.s32.totalorder %s27, 0
      %p188 = por %p186, %p187
      %p189 = scmp.ne.s32.totalorder %s177, %s178
      %p190 = scmp.eq.s32.totalorder %s28, 1
      %p191 = por %p189, %p190
      %p193 = scmp.ne.s32.totalorder %s178, %s192
      %p194 = scmp.eq.s32.totalorder %s28, 0
      %p195 = por %p193, %p194
      %s196 = ssub.s32 %s29, %s41
      %s197 = ssub.s32 %s30, %s37
      %s198 = sor.u32 %s196, %s197
      %p199 = scmp.eq.s32.totalorder %s198, 0
      %s201 = sadd.s32 %s200, 1
      %s202 = scalar_select %p199, %s200, %s201
      %p205 = pneg %p199
      %p206 = scmp.eq.s32.totalorder %s22, 1
      %p207 = por %p205, %p206
      %p208 = scmp.ne.s32.totalorder %s200, %s203
      %p209 = scmp.eq.s32.totalorder %s22, 0
      %p210 = por %p208, %p209
      %p211 = scmp.ne.s32.totalorder %s200, %s203
      %p212 = scmp.eq.s32.totalorder %s27, 1
      %p213 = por %p211, %p212
      %p214 = scmp.ne.s32.totalorder %s203, %s204
      %p215 = scmp.eq.s32.totalorder %s27, 0
      %p216 = por %p214, %p215
      %p217 = scmp.ne.s32.totalorder %s203, %s204
      %p218 = scmp.eq.s32.totalorder %s28, 1
      %p219 = por %p217, %p218
      %p221 = scmp.ne.s32.totalorder %s204, %s220
      %p222 = scmp.eq.s32.totalorder %s28, 0
      %p223 = por %p221, %p222
      %s224 = ssub.s32 %s29, %s41
      %s225 = ssub.s32 %s30, %s37
      %s226 = sor.u32 %s224, %s225
      %p227 = scmp.eq.s32.totalorder %s226, 0
      %s229 = sadd.s32 %s228, 1
      %s230 = scalar_select %p227, %s228, %s229
      %p233 = pneg %p227
      %p234 = scmp.eq.s32.totalorder %s22, 1
      %p235 = por %p233, %p234
      %p236 = scmp.ne.s32.totalorder %s228, %s231
      %p237 = scmp.eq.s32.totalorder %s22, 0
      %p238 = por %p236, %p237
      %p239 = scmp.ne.s32.totalorder %s228, %s231
      %p240 = scmp.eq.s32.totalorder %s27, 1
      %p241 = por %p239, %p240
      %p242 = scmp.ne.s32.totalorder %s231, %s232
      %p243 = scmp.eq.s32.totalorder %s27, 0
      %p244 = por %p242, %p243
      %p245 = scmp.ne.s32.totalorder %s231, %s232
      %p246 = scmp.eq.s32.totalorder %s28, 1
      %p247 = por %p245, %p246
      %p249 = scmp.ne.s32.totalorder %s232, %s248
      %p250 = scmp.eq.s32.totalorder %s28, 0
      %p251 = por %p249, %p250
      %s252 = ssub.s32 %s29, %s41
      %s253 = ssub.s32 %s30, %s37
      %s254 = sor.u32 %s252, %s253
      %p255 = scmp.eq.s32.totalorder %s254, 0
      %s257 = sadd.s32 %s256, 1
      %s258 = scalar_select %p255, %s256, %s257
      %p261 = pneg %p255
      %p262 = scmp.eq.s32.totalorder %s22, 1
      %p263 = por %p261, %p262
      %p264 = scmp.ne.s32.totalorder %s256, %s259
      %p265 = scmp.eq.s32.totalorder %s22, 0
      %p266 = por %p264, %p265
      %p267 = scmp.ne.s32.totalorder %s256, %s259
      %p268 = scmp.eq.s32.totalorder %s27, 1
      %p269 = por %p267, %p268
      %p270 = scmp.ne.s32.totalorder %s259, %s260
      %p271 = scmp.eq.s32.totalorder %s27, 0
      %p272 = por %p270, %p271
      %p273 = scmp.ne.s32.totalorder %s259, %s260
      %p274 = scmp.eq.s32.totalorder %s28, 1
      %p275 = por %p273, %p274
      %p277 = scmp.ne.s32.totalorder %s260, %s276
      %p278 = scmp.eq.s32.totalorder %s28, 0
      %p279 = por %p277, %p278
      %p280 = scmp.le.s32.totalorder 1, %s22
      %p281 = scmp.lt.s32.totalorder %s22, 3
      %p282 = pnand %p280, %p281
      %p283 = pneg %p282
      // Predicated region
      $region9: #{tpu_custom_call.1} parent=5 // pred_check
        _
      $region10: #{tpu_custom_call.1} parent=5 // pred_check_branch
        %285 = sbr.rel (%p282) target = $region12
      $region11: #{tpu_custom_call.1} parent=5 // pred_region
        %s286 = ssub.s32 %s22, 1
        // Predicated region
        $region13: #{tpu_custom_call.1} parent=11 // pred_check
          %p287 = pneg %p83
        $region14: #{tpu_custom_call.1} parent=11 // pred_check_branch
          %289 = sbr.rel (%p287) target = $region16
        $region15: #{tpu_custom_call.1} parent=11 // pred_region
          _
        $region16: #{tpu_custom_call.1} parent=11 // pred_fallthru
          _
        // Predicated region
        $region17: #{tpu_custom_call.1} parent=11 // pred_check
          %p290 = pneg %p104
        $region18: #{tpu_custom_call.1} parent=11 // pred_check_branch
          %292 = sbr.rel (%p290) target = $region20
        $region19: #{tpu_custom_call.1} parent=11 // pred_region
          _
        $region20: #{tpu_custom_call.1} parent=11 // pred_fallthru
          _
        // Predicated region
        $region21: #{tpu_custom_call.1} parent=11 // pred_check
          %p293 = pneg %p125
        $region22: #{tpu_custom_call.1} parent=11 // pred_check_branch
          %295 = sbr.rel (%p293) target = $region24
        $region23: #{tpu_custom_call.1} parent=11 // pred_region
          _
        $region24: #{tpu_custom_call.1} parent=11 // pred_fallthru
          _
        // Predicated region
        $region25: #{tpu_custom_call.1} parent=11 // pred_check
          %p296 = pneg %p146
        $region26: #{tpu_custom_call.1} parent=11 // pred_check_branch
          %298 = sbr.rel (%p296) target = $region28
        $region27: #{tpu_custom_call.1} parent=11 // pred_region
          _
        $region28: #{tpu_custom_call.1} parent=11 // pred_fallthru
          _
        // Predicated region
        $region29: #{tpu_custom_call.1} parent=11 // pred_check
          %p299 = pneg %p167
        $region30: #{tpu_custom_call.1} parent=11 // pred_check_branch
          %301 = sbr.rel (%p299) target = $region32
        $region31: #{tpu_custom_call.1} parent=11 // pred_region
          _
        $region32: #{tpu_custom_call.1} parent=11 // pred_fallthru
          _
        // Predicated region
        $region33: #{tpu_custom_call.1} parent=11 // pred_check
          %p302 = pneg %p188
        $region34: #{tpu_custom_call.1} parent=11 // pred_check_branch
          %304 = sbr.rel (%p302) target = $region36
        $region35: #{tpu_custom_call.1} parent=11 // pred_region
          _
        $region36: #{tpu_custom_call.1} parent=11 // pred_fallthru
          _
      $region12: #{tpu_custom_call.1} parent=5 // pred_fallthru
        _
      %p305 = scmp.lt.s32.totalorder %s22, 2
      // Predicated region
      $region37: #{tpu_custom_call.1} parent=5 // pred_check
        %p306 = pneg %p305
      $region38: #{tpu_custom_call.1} parent=5 // pred_check_branch
        %308 = sbr.rel (%p306) target = $region40
      $region39: #{tpu_custom_call.1} parent=5 // pred_region
        // Predicated region
        $region41: #{tpu_custom_call.1} parent=39 // pred_check
          %p309 = pneg %p56
        $region42: #{tpu_custom_call.1} parent=39 // pred_check_branch
          %311 = sbr.rel (%p309) target = $region44
        $region43: #{tpu_custom_call.1} parent=39 // pred_region
          %s312 = smul.u32 32, %s30
          %p313 = scmp.lt.s32.totalorder %s29, 1
          %s314 = scalar_select %p313, %s29, 1
          %p315 = scmp.lt.s32.totalorder %s312, 31
          %s316 = scalar_select %p315, %s312, 31
          %s317 = smul.addr %s314, 32
          %s318 = sadd.s32 %s316, %s317
          %s319 = smul.addr %s318, 8
          %s320 = scalar_lea.vmem %s0, %s319
          %s321 = smul.u32 32, %s30
        $region44: #{tpu_custom_call.1} parent=39 // pred_fallthru
          _
      $region40: #{tpu_custom_call.1} parent=5 // pred_fallthru
        _
      %p322 = scmp.le.s32.totalorder 1, %s22
      %p323 = scmp.lt.s32.totalorder %s22, 3
      %p324 = pnand %p322, %p323
      %p325 = pneg %p324
      // Predicated region
      $region45: #{tpu_custom_call.1} parent=5 // pred_check
        _
      $region46: #{tpu_custom_call.1} parent=5 // pred_check_branch
        %327 = sbr.rel (%p324) target = $region48
      $region47: #{tpu_custom_call.1} parent=5 // pred_region
        %s328 = ssub.s32 %s22, 1
        %s329 = smul.u32 32, %s32
        %p330 = scmp.lt.s32.totalorder %s31, 1
        %s331 = scalar_select %p330, %s31, 1
        %p332 = scmp.lt.s32.totalorder %s329, 31
        %s333 = scalar_select %p332, %s329, 31
        %s334 = smul.addr %s331, 32
        %s335 = sadd.s32 %s333, %s334
        %s336 = smul.addr %s335, 8
        %s337 = scalar_lea.vmem %s0, %s336
        %p338 = pneg %p62
        %p339 = pneg %p59
        %p340 = pneg %p83
        %p341 = pneg %p80
        %p342 = pneg %p104
        %p343 = pneg %p101
        %p344 = pneg %p125
        %p345 = pneg %p122
        %p346 = pneg %p146
        %p347 = pneg %p143
        %p348 = pneg %p167
        %p349 = pneg %p164
        %p350 = pneg %p188
        %p351 = pneg %p185
        %p352 = pneg %p216
        %p353 = pneg %p213
        %s354 = sand.u32 %s203, 1
        %s355 = scalar_lea.sflag [#allocation3], %s354
        %s356 = sand.u32 %s203, 1
        %s357 = smul.addr %s356, 256
        %s358 = scalar_lea.vmem [#allocation2], %s357
        %p359 = pneg %p244
        %p360 = pneg %p241
        %s361 = sand.u32 %s27, 1
        %s362 = scalar_lea.sflag [#allocation5], %s361
        %s363 = sand.u32 %s231, 1
        %s364 = smul.addr %s363, 256
        %s365 = scalar_lea.vmem [#allocation4], %s364
        %p366 = pneg %p272
        %p367 = pneg %p269
        %s368 = sand.u32 %s27, 1
        %s369 = scalar_lea.sflag [#allocation5], %s368
        %s370 = sand.u32 %s259, 1
        %s371 = smul.addr %s370, 256
        %s372 = scalar_lea.vmem [#allocation6], %s371
        %s373 = smul.u32 32, %s32
        %p374 = scmp.lt.s32.totalorder %s31, 1
        %s375 = scalar_select %p374, %s31, 1
        %p376 = scmp.lt.s32.totalorder %s373, 31
        %s377 = scalar_select %p376, %s373, 31
        %s378 = smul.addr %s375, 32
        %s379 = sadd.s32 %s377, %s378
        %s380 = smul.addr %s379, 8
        %s381 = scalar_lea.vmem %s0, %s380
        %s382 = smul.u32 32, %s32
        %s383 = smul.u32 32, %s32
        %s384 = smul.u32 32, %s32
        %s385 = smul.u32 32, %s32
        %v386 = vld [vmem:[%s381] sm:$0xff]
        %v387 = vld [vmem:[%s381 + $0x8] sm:$0xff]
        %v388 = vld [vmem:[%s381 + $0x10] sm:$0xff]
        %v389 = vld [vmem:[%s381 + $0x18] sm:$0xff]
        %v390 = vld [vmem:[%s381 + $0x20] sm:$0xff]
        %v391 = vld [vmem:[%s381 + $0x28] sm:$0xff]
        %v392 = vld [vmem:[%s381 + $0x30] sm:$0xff]
        %v393 = vld [vmem:[%s381 + $0x38] sm:$0xff]
        %v394 = vld [vmem:[%s381 + $0x40] sm:$0xff]
        %v395 = vld [vmem:[%s381 + $0x48] sm:$0xff]
        %v396 = vld [vmem:[%s381 + $0x50] sm:$0xff]
        %v397 = vld [vmem:[%s381 + $0x58] sm:$0xff]
        %v398 = vld [vmem:[%s381 + $0x60] sm:$0xff]
        %v399 = vld [vmem:[%s381 + $0x68] sm:$0xff]
        %v400 = vld [vmem:[%s381 + $0x70] sm:$0xff]
        %v401 = vld [vmem:[%s381 + $0x78] sm:$0xff]
        %v402 = vld [vmem:[%s381 + $0x80] sm:$0xff]
        %v403 = vld [vmem:[%s381 + $0x88] sm:$0xff]
        %v404 = vld [vmem:[%s381 + $0x90] sm:$0xff]
        %v405 = vld [vmem:[%s381 + $0x98] sm:$0xff]
        %v406 = vld [vmem:[%s381 + $0xa0] sm:$0xff]
        %v407 = vld [vmem:[%s381 + $0xa8] sm:$0xff]
        %v408 = vld [vmem:[%s381 + $0xb0] sm:$0xff]
        %v409 = vld [vmem:[%s381 + $0xb8] sm:$0xff]
        %v410 = vld [vmem:[%s381 + $0xc0] sm:$0xff]
        %v411 = vld [vmem:[%s381 + $0xc8] sm:$0xff]
        %v412 = vld [vmem:[%s381 + $0xd0] sm:$0xff]
        %v413 = vld [vmem:[%s381 + $0xd8] sm:$0xff]
        %v414 = vld [vmem:[%s381 + $0xe0] sm:$0xff]
        %v415 = vld [vmem:[%s381 + $0xe8] sm:$0xff]
        %v416 = vld [vmem:[%s381 + $0xf0] sm:$0xff]
        %v417 = vld [vmem:[%s381 + $0xf8] sm:$0xff]
        %v418 = vld [vmem:[%s1] sm:$0xff]
        %v419 = vld [vmem:[%s1 + $0x8] sm:$0xff]
        %v420 = vld [vmem:[%s1 + $0x10] sm:$0xff]
        %v421 = vld [vmem:[%s1 + $0x18] sm:$0xff]
        %v422 = vld [vmem:[%s2] sm:$0x1]
        %v424 = vperm.slane %v422, 0
        %vm426 = vcmask 261120
        %v428 = vsel %vm426, %v386, 0
        %v431 = vsel %vm426, %v387, 0
        %v434 = vsel %vm426, %v388, 0
        %v437 = vsel %vm426, %v389, 0
        %v440 = vsel %vm426, %v390, 0
        %v443 = vsel %vm426, %v391, 0
        %v446 = vsel %vm426, %v392, 0
        %v449 = vsel %vm426, %v393, 0
        %v452 = vsel %vm426, %v394, 0
        %v455 = vsel %vm426, %v395, 0
        %v458 = vsel %vm426, %v396, 0
        %v461 = vsel %vm426, %v397, 0
        %v464 = vsel %vm426, %v398, 0
        %v467 = vsel %vm426, %v399, 0
        %v470 = vsel %vm426, %v400, 0
        %v473 = vsel %vm426, %v401, 0
        %v476 = vsel %vm426, %v402, 0
        %v479 = vsel %vm426, %v403, 0
        %v482 = vsel %vm426, %v404, 0
        %v485 = vsel %vm426, %v405, 0
        %v488 = vsel %vm426, %v406, 0
        %v491 = vsel %vm426, %v407, 0
        %v494 = vsel %vm426, %v408, 0
        %v497 = vsel %vm426, %v409, 0
        %v500 = vsel %vm426, %v410, 0
        %v503 = vsel %vm426, %v411, 0
        %v506 = vsel %vm426, %v412, 0
        %v509 = vsel %vm426, %v413, 0
        %v512 = vsel %vm426, %v414, 0
        %v515 = vsel %vm426, %v415, 0
        %v518 = vsel %vm426, %v416, 0
        %v521 = vsel %vm426, %v417, 0
        %523 = vmatpush.msra.mxu0 0.0
        %524 = vmatpush.msra.mxu0 0.0
        %525 = vmatpush.msra.mxu0 0.0
        %526 = vmatpush.msra.mxu0 0.0
        %527 = vmatpush.msra.mxu0 0.0
        %528 = vmatpush.msra.mxu0 0.0
        %529 = vmatpush.msra.mxu0 0.0
        %530 = vmatpush.msra.mxu0 0.0
        %531 = vmatpush.msra.mxu0 0.0
        %532 = vmatpush.msra.mxu0 0.0
        %533 = vmatpush.msra.mxu0 0.0
        %534 = vmatpush.msra.mxu0 0.0
        %535 = vmatpush.msra.mxu0 %v421
        %536 = vmatpush.msra.mxu0 %v420
        %537 = vmatpush.msra.mxu0 %v419
        %538 = vmatpush.msra.mxu0 %v418
        %539 = vmatmul.f32.gmra.mxu0 %v428
        %v540 = vpop.f32.mrf.mxu0
        %v541 = vadd.f32 %v424, %v540
        %542 = vmatmul.f32.gmra.mxu0 %v431
        %v543 = vpop.f32.mrf.mxu0
        %v544 = vadd.f32 %v424, %v543
        %545 = vmatmul.f32.gmra.mxu0 %v434
        %v546 = vpop.f32.mrf.mxu0
        %v547 = vadd.f32 %v424, %v546
        %548 = vmatmul.f32.gmra.mxu0 %v437
        %v549 = vpop.f32.mrf.mxu0
        %v550 = vadd.f32 %v424, %v549
        %551 = vmatmul.f32.gmra.mxu0 %v440
        %v552 = vpop.f32.mrf.mxu0
        %v553 = vadd.f32 %v424, %v552
        %554 = vmatmul.f32.gmra.mxu0 %v443
        %v555 = vpop.f32.mrf.mxu0
        %v556 = vadd.f32 %v424, %v555
        %557 = vmatmul.f32.gmra.mxu0 %v446
        %v558 = vpop.f32.mrf.mxu0
        %v559 = vadd.f32 %v424, %v558
        %560 = vmatmul.f32.gmra.mxu0 %v449
        %v561 = vpop.f32.mrf.mxu0
        %v562 = vadd.f32 %v424, %v561
        %563 = vmatmul.f32.gmra.mxu0 %v452
        %v564 = vpop.f32.mrf.mxu0
        %v565 = vadd.f32 %v424, %v564
        %566 = vmatmul.f32.gmra.mxu0 %v455
        %v567 = vpop.f32.mrf.mxu0
        %v568 = vadd.f32 %v424, %v567
        %569 = vmatmul.f32.gmra.mxu0 %v458
        %v570 = vpop.f32.mrf.mxu0
        %v571 = vadd.f32 %v424, %v570
        %572 = vmatmul.f32.gmra.mxu0 %v461
        %v573 = vpop.f32.mrf.mxu0
        %v574 = vadd.f32 %v424, %v573
        %575 = vmatmul.f32.gmra.mxu0 %v464
        %v576 = vpop.f32.mrf.mxu0
        %v577 = vadd.f32 %v424, %v576
        %578 = vmatmul.f32.gmra.mxu0 %v467
        %v579 = vpop.f32.mrf.mxu0
        %v580 = vadd.f32 %v424, %v579
        %581 = vmatmul.f32.gmra.mxu0 %v470
        %v582 = vpop.f32.mrf.mxu0
        %v583 = vadd.f32 %v424, %v582
        %584 = vmatmul.f32.gmra.mxu0 %v473
        %v585 = vpop.f32.mrf.mxu0
        %v586 = vadd.f32 %v424, %v585
        %587 = vmatmul.f32.gmra.mxu0 %v476
        %v588 = vpop.f32.mrf.mxu0
        %v589 = vadd.f32 %v424, %v588
        %590 = vmatmul.f32.gmra.mxu0 %v479
        %v591 = vpop.f32.mrf.mxu0
        %v592 = vadd.f32 %v424, %v591
        %593 = vmatmul.f32.gmra.mxu0 %v482
        %v594 = vpop.f32.mrf.mxu0
        %v595 = vadd.f32 %v424, %v594
        %596 = vmatmul.f32.gmra.mxu0 %v485
        %v597 = vpop.f32.mrf.mxu0
        %v598 = vadd.f32 %v424, %v597
        %599 = vmatmul.f32.gmra.mxu0 %v488
        %v600 = vpop.f32.mrf.mxu0
        %v601 = vadd.f32 %v424, %v600
        %602 = vmatmul.f32.gmra.mxu0 %v491
        %v603 = vpop.f32.mrf.mxu0
        %v604 = vadd.f32 %v424, %v603
        %605 = vmatmul.f32.gmra.mxu0 %v494
        %v606 = vpop.f32.mrf.mxu0
        %v607 = vadd.f32 %v424, %v606
        %608 = vmatmul.f32.gmra.mxu0 %v497
        %v609 = vpop.f32.mrf.mxu0
        %v610 = vadd.f32 %v424, %v609
        %611 = vmatmul.f32.gmra.mxu0 %v500
        %v612 = vpop.f32.mrf.mxu0
        %v613 = vadd.f32 %v424, %v612
        %614 = vmatmul.f32.gmra.mxu0 %v503
        %v615 = vpop.f32.mrf.mxu0
        %v616 = vadd.f32 %v424, %v615
        %617 = vmatmul.f32.gmra.mxu0 %v506
        %v618 = vpop.f32.mrf.mxu0
        %v619 = vadd.f32 %v424, %v618
        %620 = vmatmul.f32.gmra.mxu0 %v509
        %v621 = vpop.f32.mrf.mxu0
        %v622 = vadd.f32 %v424, %v621
        %623 = vmatmul.f32.gmra.mxu0 %v512
        %v624 = vpop.f32.mrf.mxu0
        %v625 = vadd.f32 %v424, %v624
        %626 = vmatmul.f32.gmra.mxu0 %v515
        %v627 = vpop.f32.mrf.mxu0
        %v628 = vadd.f32 %v424, %v627
        %629 = vmatmul.f32.gmra.mxu0 %v518
        %v630 = vpop.f32.mrf.mxu0
        %v631 = vadd.f32 %v424, %v630
        %632 = vmatmul.f32.gmra.mxu0 %v521
        %v633 = vpop.f32.mrf.mxu0
        %v634 = vadd.f32 %v424, %v633
        %635 = vdwg.mxu0
        %v636 = vmul.f32 %v541, 0.088388346
        %v637 = vmul.f32 %v544, 0.088388346
        %v638 = vmul.f32 %v547, 0.088388346
        %v639 = vmul.f32 %v550, 0.088388346
        %v640 = vmul.f32 %v553, 0.088388346
        %v641 = vmul.f32 %v556, 0.088388346
        %v642 = vmul.f32 %v559, 0.088388346
        %v643 = vmul.f32 %v562, 0.088388346
        %v644 = vmul.f32 %v565, 0.088388346
        %v645 = vmul.f32 %v568, 0.088388346
        %v646 = vmul.f32 %v571, 0.088388346
        %v647 = vmul.f32 %v574, 0.088388346
        %v648 = vmul.f32 %v577, 0.088388346
        %v649 = vmul.f32 %v580, 0.088388346
        %v650 = vmul.f32 %v583, 0.088388346
        %v651 = vmul.f32 %v586, 0.088388346
        %v652 = vmul.f32 %v589, 0.088388346
        %v653 = vmul.f32 %v592, 0.088388346
        %v654 = vmul.f32 %v595, 0.088388346
        %v655 = vmul.f32 %v598, 0.088388346
        %v656 = vmul.f32 %v601, 0.088388346
        %v657 = vmul.f32 %v604, 0.088388346
        %v658 = vmul.f32 %v607, 0.088388346
        %v659 = vmul.f32 %v610, 0.088388346
        %v660 = vmul.f32 %v613, 0.088388346
        %v661 = vmul.f32 %v616, 0.088388346
        %v662 = vmul.f32 %v619, 0.088388346
        %v663 = vmul.f32 %v622, 0.088388346
        %v664 = vmul.f32 %v625, 0.088388346
        %v665 = vmul.f32 %v628, 0.088388346
        %v666 = vmul.f32 %v631, 0.088388346
        %v667 = vmul.f32 %v634, 0.088388346
        %668 = vst [vmem:[%s358] sm:$0xff] %v636
        %669 = vst [vmem:[%s358 + $0x8] sm:$0xff] %v637
        %670 = vst [vmem:[%s358 + $0x10] sm:$0xff] %v638
        %671 = vst [vmem:[%s358 + $0x18] sm:$0xff] %v639
        %672 = vst [vmem:[%s358 + $0x20] sm:$0xff] %v640
        %673 = vst [vmem:[%s358 + $0x28] sm:$0xff] %v641
        %674 = vst [vmem:[%s358 + $0x30] sm:$0xff] %v642
        %675 = vst [vmem:[%s358 + $0x38] sm:$0xff] %v643
        %676 = vst [vmem:[%s358 + $0x40] sm:$0xff] %v644
        %677 = vst [vmem:[%s358 + $0x48] sm:$0xff] %v645
        %678 = vst [vmem:[%s358 + $0x50] sm:$0xff] %v646
        %679 = vst [vmem:[%s358 + $0x58] sm:$0xff] %v647
        %680 = vst [vmem:[%s358 + $0x60] sm:$0xff] %v648
        %681 = vst [vmem:[%s358 + $0x68] sm:$0xff] %v649
        %682 = vst [vmem:[%s358 + $0x70] sm:$0xff] %v650
        %683 = vst [vmem:[%s358 + $0x78] sm:$0xff] %v651
        %684 = vst [vmem:[%s358 + $0x80] sm:$0xff] %v652
        %685 = vst [vmem:[%s358 + $0x88] sm:$0xff] %v653
        %686 = vst [vmem:[%s358 + $0x90] sm:$0xff] %v654
        %687 = vst [vmem:[%s358 + $0x98] sm:$0xff] %v655
        %688 = vst [vmem:[%s358 + $0xa0] sm:$0xff] %v656
        %689 = vst [vmem:[%s358 + $0xa8] sm:$0xff] %v657
        %690 = vst [vmem:[%s358 + $0xb0] sm:$0xff] %v658
        %691 = vst [vmem:[%s358 + $0xb8] sm:$0xff] %v659
        %692 = vst [vmem:[%s358 + $0xc0] sm:$0xff] %v660
        %693 = vst [vmem:[%s358 + $0xc8] sm:$0xff] %v661
        %694 = vst [vmem:[%s358 + $0xd0] sm:$0xff] %v662
        %695 = vst [vmem:[%s358 + $0xd8] sm:$0xff] %v663
        %696 = vst [vmem:[%s358 + $0xe0] sm:$0xff] %v664
        %697 = vst [vmem:[%s358 + $0xe8] sm:$0xff] %v665
        %698 = vst [vmem:[%s358 + $0xf0] sm:$0xff] %v666
        %699 = vst [vmem:[%s358 + $0xf8] sm:$0xff] %v667
        %v700 = vld [vmem:[%s3] sm:$0xff]
        %v701 = vld [vmem:[%s3 + $0x8] sm:$0xff]
        %v702 = vld [vmem:[%s3 + $0x10] sm:$0xff]
        %v703 = vld [vmem:[%s3 + $0x18] sm:$0xff]
        %v704 = vld [vmem:[%s4] sm:$0x1]
        %v706 = vperm.slane %v704, 0
        %708 = vmatpush.msra.mxu0 0.0
        %709 = vmatpush.msra.mxu0 0.0
        %710 = vmatpush.msra.mxu0 0.0
        %711 = vmatpush.msra.mxu0 0.0
        %712 = vmatpush.msra.mxu0 0.0
        %713 = vmatpush.msra.mxu0 0.0
        %714 = vmatpush.msra.mxu0 0.0
        %715 = vmatpush.msra.mxu0 0.0
        %716 = vmatpush.msra.mxu0 0.0
        %717 = vmatpush.msra.mxu0 0.0
        %718 = vmatpush.msra.mxu0 0.0
        %719 = vmatpush.msra.mxu0 0.0
        %720 = vmatpush.msra.mxu0 %v703
        %721 = vmatpush.msra.mxu0 %v702
        %722 = vmatpush.msra.mxu0 %v701
        %723 = vmatpush.msra.mxu0 %v700
        %724 = vmatmul.f32.gmra.mxu0 %v428
        %v725 = vpop.f32.mrf.mxu0
        %v726 = vadd.f32 %v706, %v725
        %727 = vmatmul.f32.gmra.mxu0 %v431
        %v728 = vpop.f32.mrf.mxu0
        %v729 = vadd.f32 %v706, %v728
        %730 = vmatmul.f32.gmra.mxu0 %v434
        %v731 = vpop.f32.mrf.mxu0
        %v732 = vadd.f32 %v706, %v731
        %733 = vmatmul.f32.gmra.mxu0 %v437
        %v734 = vpop.f32.mrf.mxu0
        %v735 = vadd.f32 %v706, %v734
        %736 = vmatmul.f32.gmra.mxu0 %v440
        %v737 = vpop.f32.mrf.mxu0
        %v738 = vadd.f32 %v706, %v737
        %739 = vmatmul.f32.gmra.mxu0 %v443
        %v740 = vpop.f32.mrf.mxu0
        %v741 = vadd.f32 %v706, %v740
        %742 = vmatmul.f32.gmra.mxu0 %v446
        %v743 = vpop.f32.mrf.mxu0
        %v744 = vadd.f32 %v706, %v743
        %745 = vmatmul.f32.gmra.mxu0 %v449
        %v746 = vpop.f32.mrf.mxu0
        %v747 = vadd.f32 %v706, %v746
        %748 = vmatmul.f32.gmra.mxu0 %v452
        %v749 = vpop.f32.mrf.mxu0
        %v750 = vadd.f32 %v706, %v749
        %751 = vmatmul.f32.gmra.mxu0 %v455
        %v752 = vpop.f32.mrf.mxu0
        %v753 = vadd.f32 %v706, %v752
        %754 = vmatmul.f32.gmra.mxu0 %v458
        %v755 = vpop.f32.mrf.mxu0
        %v756 = vadd.f32 %v706, %v755
        %757 = vmatmul.f32.gmra.mxu0 %v461
        %v758 = vpop.f32.mrf.mxu0
        %v759 = vadd.f32 %v706, %v758
        %760 = vmatmul.f32.gmra.mxu0 %v464
        %v761 = vpop.f32.mrf.mxu0
        %v762 = vadd.f32 %v706, %v761
        %763 = vmatmul.f32.gmra.mxu0 %v467
        %v764 = vpop.f32.mrf.mxu0
        %v765 = vadd.f32 %v706, %v764
        %766 = vmatmul.f32.gmra.mxu0 %v470
        %v767 = vpop.f32.mrf.mxu0
        %v768 = vadd.f32 %v706, %v767
        %769 = vmatmul.f32.gmra.mxu0 %v473
        %v770 = vpop.f32.mrf.mxu0
        %v771 = vadd.f32 %v706, %v770
        %772 = vmatmul.f32.gmra.mxu0 %v476
        %v773 = vpop.f32.mrf.mxu0
        %v774 = vadd.f32 %v706, %v773
        %775 = vmatmul.f32.gmra.mxu0 %v479
        %v776 = vpop.f32.mrf.mxu0
        %v777 = vadd.f32 %v706, %v776
        %778 = vmatmul.f32.gmra.mxu0 %v482
        %v779 = vpop.f32.mrf.mxu0
        %v780 = vadd.f32 %v706, %v779
        %781 = vmatmul.f32.gmra.mxu0 %v485
        %v782 = vpop.f32.mrf.mxu0
        %v783 = vadd.f32 %v706, %v782
        %784 = vmatmul.f32.gmra.mxu0 %v488
        %v785 = vpop.f32.mrf.mxu0
        %v786 = vadd.f32 %v706, %v785
        %787 = vmatmul.f32.gmra.mxu0 %v491
        %v788 = vpop.f32.mrf.mxu0
        %v789 = vadd.f32 %v706, %v788
        %790 = vmatmul.f32.gmra.mxu0 %v494
        %v791 = vpop.f32.mrf.mxu0
        %v792 = vadd.f32 %v706, %v791
        %793 = vmatmul.f32.gmra.mxu0 %v497
        %v794 = vpop.f32.mrf.mxu0
        %v795 = vadd.f32 %v706, %v794
        %796 = vmatmul.f32.gmra.mxu0 %v500
        %v797 = vpop.f32.mrf.mxu0
        %v798 = vadd.f32 %v706, %v797
        %799 = vmatmul.f32.gmra.mxu0 %v503
        %v800 = vpop.f32.mrf.mxu0
        %v801 = vadd.f32 %v706, %v800
        %802 = vmatmul.f32.gmra.mxu0 %v506
        %v803 = vpop.f32.mrf.mxu0
        %v804 = vadd.f32 %v706, %v803
        %805 = vmatmul.f32.gmra.mxu0 %v509
        %v806 = vpop.f32.mrf.mxu0
        %v807 = vadd.f32 %v706, %v806
        %808 = vmatmul.f32.gmra.mxu0 %v512
        %v809 = vpop.f32.mrf.mxu0
        %v810 = vadd.f32 %v706, %v809
        %811 = vmatmul.f32.gmra.mxu0 %v515
        %v812 = vpop.f32.mrf.mxu0
        %v813 = vadd.f32 %v706, %v812
        %814 = vmatmul.f32.gmra.mxu0 %v518
        %v815 = vpop.f32.mrf.mxu0
        %v816 = vadd.f32 %v706, %v815
        %817 = vmatmul.f32.gmra.mxu0 %v521
        %v818 = vpop.f32.mrf.mxu0
        %v819 = vadd.f32 %v706, %v818
        %820 = vdwg.mxu0
        %821 = vst [vmem:[%s365] sm:$0xff] %v726
        %822 = vst [vmem:[%s365 + $0x8] sm:$0xff] %v729
        %823 = vst [vmem:[%s365 + $0x10] sm:$0xff] %v732
        %824 = vst [vmem:[%s365 + $0x18] sm:$0xff] %v735
        %825 = vst [vmem:[%s365 + $0x20] sm:$0xff] %v738
        %826 = vst [vmem:[%s365 + $0x28] sm:$0xff] %v741
        %827 = vst [vmem:[%s365 + $0x30] sm:$0xff] %v744
        %828 = vst [vmem:[%s365 + $0x38] sm:$0xff] %v747
        %829 = vst [vmem:[%s365 + $0x40] sm:$0xff] %v750
        %830 = vst [vmem:[%s365 + $0x48] sm:$0xff] %v753
        %831 = vst [vmem:[%s365 + $0x50] sm:$0xff] %v756
        %832 = vst [vmem:[%s365 + $0x58] sm:$0xff] %v759
        %833 = vst [vmem:[%s365 + $0x60] sm:$0xff] %v762
        %834 = vst [vmem:[%s365 + $0x68] sm:$0xff] %v765
        %835 = vst [vmem:[%s365 + $0x70] sm:$0xff] %v768
        %836 = vst [vmem:[%s365 + $0x78] sm:$0xff] %v771
        %837 = vst [vmem:[%s365 + $0x80] sm:$0xff] %v774
        %838 = vst [vmem:[%s365 + $0x88] sm:$0xff] %v777
        %839 = vst [vmem:[%s365 + $0x90] sm:$0xff] %v780
        %840 = vst [vmem:[%s365 + $0x98] sm:$0xff] %v783
        %841 = vst [vmem:[%s365 + $0xa0] sm:$0xff] %v786
        %842 = vst [vmem:[%s365 + $0xa8] sm:$0xff] %v789
        %843 = vst [vmem:[%s365 + $0xb0] sm:$0xff] %v792
        %844 = vst [vmem:[%s365 + $0xb8] sm:$0xff] %v795
        %845 = vst [vmem:[%s365 + $0xc0] sm:$0xff] %v798
        %846 = vst [vmem:[%s365 + $0xc8] sm:$0xff] %v801
        %847 = vst [vmem:[%s365 + $0xd0] sm:$0xff] %v804
        %848 = vst [vmem:[%s365 + $0xd8] sm:$0xff] %v807
        %849 = vst [vmem:[%s365 + $0xe0] sm:$0xff] %v810
        %850 = vst [vmem:[%s365 + $0xe8] sm:$0xff] %v813
        %851 = vst [vmem:[%s365 + $0xf0] sm:$0xff] %v816
        %852 = vst [vmem:[%s365 + $0xf8] sm:$0xff] %v819
        %v853 = vld [vmem:[%s5] sm:$0xff]
        %v854 = vld [vmem:[%s5 + $0x8] sm:$0xff]
        %v855 = vld [vmem:[%s5 + $0x10] sm:$0xff]
        %v856 = vld [vmem:[%s5 + $0x18] sm:$0xff]
        %v857 = vld [vmem:[%s6] sm:$0x1]
        %v859 = vperm.slane %v857, 0
        %861 = vmatpush.msra.mxu0 0.0
        %862 = vmatpush.msra.mxu0 0.0
        %863 = vmatpush.msra.mxu0 0.0
        %864 = vmatpush.msra.mxu0 0.0
        %865 = vmatpush.msra.mxu0 0.0
        %866 = vmatpush.msra.mxu0 0.0
        %867 = vmatpush.msra.mxu0 0.0
        %868 = vmatpush.msra.mxu0 0.0
        %869 = vmatpush.msra.mxu0 0.0
        %870 = vmatpush.msra.mxu0 0.0
        %871 = vmatpush.msra.mxu0 0.0
        %872 = vmatpush.msra.mxu0 0.0
        %873 = vmatpush.msra.mxu0 %v856
        %874 = vmatpush.msra.mxu0 %v855
        %875 = vmatpush.msra.mxu0 %v854
        %876 = vmatpush.msra.mxu0 %v853
        %877 = vmatmul.f32.gmra.mxu0 %v428
        %v878 = vpop.f32.mrf.mxu0
        %v879 = vadd.f32 %v859, %v878
        %880 = vmatmul.f32.gmra.mxu0 %v431
        %v881 = vpop.f32.mrf.mxu0
        %v882 = vadd.f32 %v859, %v881
        %883 = vmatmul.f32.gmra.mxu0 %v434
        %v884 = vpop.f32.mrf.mxu0
        %v885 = vadd.f32 %v859, %v884
        %886 = vmatmul.f32.gmra.mxu0 %v437
        %v887 = vpop.f32.mrf.mxu0
        %v888 = vadd.f32 %v859, %v887
        %889 = vmatmul.f32.gmra.mxu0 %v440
        %v890 = vpop.f32.mrf.mxu0
        %v891 = vadd.f32 %v859, %v890
        %892 = vmatmul.f32.gmra.mxu0 %v443
        %v893 = vpop.f32.mrf.mxu0
        %v894 = vadd.f32 %v859, %v893
        %895 = vmatmul.f32.gmra.mxu0 %v446
        %v896 = vpop.f32.mrf.mxu0
        %v897 = vadd.f32 %v859, %v896
        %898 = vmatmul.f32.gmra.mxu0 %v449
        %v899 = vpop.f32.mrf.mxu0
        %v900 = vadd.f32 %v859, %v899
        %901 = vmatmul.f32.gmra.mxu0 %v452
        %v902 = vpop.f32.mrf.mxu0
        %v903 = vadd.f32 %v859, %v902
        %904 = vmatmul.f32.gmra.mxu0 %v455
        %v905 = vpop.f32.mrf.mxu0
        %v906 = vadd.f32 %v859, %v905
        %907 = vmatmul.f32.gmra.mxu0 %v458
        %v908 = vpop.f32.mrf.mxu0
        %v909 = vadd.f32 %v859, %v908
        %910 = vmatmul.f32.gmra.mxu0 %v461
        %v911 = vpop.f32.mrf.mxu0
        %v912 = vadd.f32 %v859, %v911
        %913 = vmatmul.f32.gmra.mxu0 %v464
        %v914 = vpop.f32.mrf.mxu0
        %v915 = vadd.f32 %v859, %v914
        %916 = vmatmul.f32.gmra.mxu0 %v467
        %v917 = vpop.f32.mrf.mxu0
        %v918 = vadd.f32 %v859, %v917
        %919 = vmatmul.f32.gmra.mxu0 %v470
        %v920 = vpop.f32.mrf.mxu0
        %v921 = vadd.f32 %v859, %v920
        %922 = vmatmul.f32.gmra.mxu0 %v473
        %v923 = vpop.f32.mrf.mxu0
        %v924 = vadd.f32 %v859, %v923
        %925 = vmatmul.f32.gmra.mxu0 %v476
        %v926 = vpop.f32.mrf.mxu0
        %v927 = vadd.f32 %v859, %v926
        %928 = vmatmul.f32.gmra.mxu0 %v479
        %v929 = vpop.f32.mrf.mxu0
        %v930 = vadd.f32 %v859, %v929
        %931 = vmatmul.f32.gmra.mxu0 %v482
        %v932 = vpop.f32.mrf.mxu0
        %v933 = vadd.f32 %v859, %v932
        %934 = vmatmul.f32.gmra.mxu0 %v485
        %v935 = vpop.f32.mrf.mxu0
        %v936 = vadd.f32 %v859, %v935
        %937 = vmatmul.f32.gmra.mxu0 %v488
        %v938 = vpop.f32.mrf.mxu0
        %v939 = vadd.f32 %v859, %v938
        %940 = vmatmul.f32.gmra.mxu0 %v491
        %v941 = vpop.f32.mrf.mxu0
        %v942 = vadd.f32 %v859, %v941
        %943 = vmatmul.f32.gmra.mxu0 %v494
        %v944 = vpop.f32.mrf.mxu0
        %v945 = vadd.f32 %v859, %v944
        %946 = vmatmul.f32.gmra.mxu0 %v497
        %v947 = vpop.f32.mrf.mxu0
        %v948 = vadd.f32 %v859, %v947
        %949 = vmatmul.f32.gmra.mxu0 %v500
        %v950 = vpop.f32.mrf.mxu0
        %v951 = vadd.f32 %v859, %v950
        %952 = vmatmul.f32.gmra.mxu0 %v503
        %v953 = vpop.f32.mrf.mxu0
        %v954 = vadd.f32 %v859, %v953
        %955 = vmatmul.f32.gmra.mxu0 %v506
        %v956 = vpop.f32.mrf.mxu0
        %v957 = vadd.f32 %v859, %v956
        %958 = vmatmul.f32.gmra.mxu0 %v509
        %v959 = vpop.f32.mrf.mxu0
        %v960 = vadd.f32 %v859, %v959
        %961 = vmatmul.f32.gmra.mxu0 %v512
        %v962 = vpop.f32.mrf.mxu0
        %v963 = vadd.f32 %v859, %v962
        %964 = vmatmul.f32.gmra.mxu0 %v515
        %v965 = vpop.f32.mrf.mxu0
        %v966 = vadd.f32 %v859, %v965
        %967 = vmatmul.f32.gmra.mxu0 %v518
        %v968 = vpop.f32.mrf.mxu0
        %v969 = vadd.f32 %v859, %v968
        %970 = vmatmul.f32.gmra.mxu0 %v521
        %v971 = vpop.f32.mrf.mxu0
        %v972 = vadd.f32 %v859, %v971
        %973 = vdwg.mxu0
        %974 = vst [vmem:[%s372] sm:$0xff] %v879
        %975 = vst [vmem:[%s372 + $0x8] sm:$0xff] %v882
        %976 = vst [vmem:[%s372 + $0x10] sm:$0xff] %v885
        %977 = vst [vmem:[%s372 + $0x18] sm:$0xff] %v888
        %978 = vst [vmem:[%s372 + $0x20] sm:$0xff] %v891
        %979 = vst [vmem:[%s372 + $0x28] sm:$0xff] %v894
        %980 = vst [vmem:[%s372 + $0x30] sm:$0xff] %v897
        %981 = vst [vmem:[%s372 + $0x38] sm:$0xff] %v900
        %982 = vst [vmem:[%s372 + $0x40] sm:$0xff] %v903
        %983 = vst [vmem:[%s372 + $0x48] sm:$0xff] %v906
        %984 = vst [vmem:[%s372 + $0x50] sm:$0xff] %v909
        %985 = vst [vmem:[%s372 + $0x58] sm:$0xff] %v912
        %986 = vst [vmem:[%s372 + $0x60] sm:$0xff] %v915
        %987 = vst [vmem:[%s372 + $0x68] sm:$0xff] %v918
        %988 = vst [vmem:[%s372 + $0x70] sm:$0xff] %v921
        %989 = vst [vmem:[%s372 + $0x78] sm:$0xff] %v924
        %990 = vst [vmem:[%s372 + $0x80] sm:$0xff] %v927
        %991 = vst [vmem:[%s372 + $0x88] sm:$0xff] %v930
        %992 = vst [vmem:[%s372 + $0x90] sm:$0xff] %v933
        %993 = vst [vmem:[%s372 + $0x98] sm:$0xff] %v936
        %994 = vst [vmem:[%s372 + $0xa0] sm:$0xff] %v939
        %995 = vst [vmem:[%s372 + $0xa8] sm:$0xff] %v942
        %996 = vst [vmem:[%s372 + $0xb0] sm:$0xff] %v945
        %997 = vst [vmem:[%s372 + $0xb8] sm:$0xff] %v948
        %998 = vst [vmem:[%s372 + $0xc0] sm:$0xff] %v951
        %999 = vst [vmem:[%s372 + $0xc8] sm:$0xff] %v954
        %1000 = vst [vmem:[%s372 + $0xd0] sm:$0xff] %v957
        %1001 = vst [vmem:[%s372 + $0xd8] sm:$0xff] %v960
        %1002 = vst [vmem:[%s372 + $0xe0] sm:$0xff] %v963
        %1003 = vst [vmem:[%s372 + $0xe8] sm:$0xff] %v966
        %1004 = vst [vmem:[%s372 + $0xf0] sm:$0xff] %v969
        %1005 = vst [vmem:[%s372 + $0xf8] sm:$0xff] %v972
        %s1006 = sand.u32 %s203, 1
        %s1007 = scalar_lea.sflag [#allocation3], %s1006
        %s1008 = sand.u32 %s203, 1
        %s1009 = smul.addr %s1008, 256
        %s1010 = scalar_lea.vmem [#allocation2], %s1009
        %s1011 = sand.u32 %s27, 1
        %s1012 = scalar_lea.sflag [#allocation5], %s1011
        %s1013 = sand.u32 %s231, 1
        %s1014 = smul.addr %s1013, 256
        %s1015 = scalar_lea.vmem [#allocation4], %s1014
        %s1016 = sand.u32 %s27, 1
        %s1017 = scalar_lea.sflag [#allocation5], %s1016
        %s1018 = sand.u32 %s259, 1
        %s1019 = smul.addr %s1018, 256
        %s1020 = scalar_lea.vmem [#allocation6], %s1019
        // Predicated region
        $region49: #{tpu_custom_call.1} parent=47 // pred_check
          %p1021 = pneg %p213
        $region50: #{tpu_custom_call.1} parent=47 // pred_check_branch
          %1023 = sbr.rel (%p1021) target = $region52
        $region51: #{tpu_custom_call.1} parent=47 // pred_region
          %s1024 = smul.u32 32, %s32
          %1026 = vsyncadd %s1007, 0
          %s1027 = smul.addr %s31, 32
          %s1028 = sadd.s32 %s1024, %s1027
          %s1029 = smul.addr %s1028, 8
          %s1030 = scalar_lea.hbm %s7, %s1029
          %s1031 = sshll.u32 %s1010, 4
          %s1032 = int_to_ptr.vmem [resolvable:$true] %s1031
          %s1033 = sshll.u32 %s1030, 4
          %s1034 = int_to_ptr.hbm [resolvable:$true] %s1033
          %1039 = dma.vmem_to_hbm [thread:$0]  %s1032, 4096, %s1034, %s1007, 128, 128, 8
        $region52: #{tpu_custom_call.1} parent=47 // pred_fallthru
          _
        // Predicated region
        $region53: #{tpu_custom_call.1} parent=47 // pred_check
          %p1040 = pneg %p241
        $region54: #{tpu_custom_call.1} parent=47 // pred_check_branch
          %1042 = sbr.rel (%p1040) target = $region56
        $region55: #{tpu_custom_call.1} parent=47 // pred_region
          %s1043 = smul.u32 32, %s32
          %1045 = vsyncadd %s1012, 0
          %s1046 = smul.addr %s31, 32
          %s1047 = sadd.s32 %s1043, %s1046
          %s1048 = smul.addr %s1047, 8
          %s1049 = scalar_lea.hbm %s8, %s1048
          %s1050 = sshll.u32 %s1015, 4
          %s1051 = int_to_ptr.vmem [resolvable:$true] %s1050
          %s1052 = sshll.u32 %s1049, 4
          %s1053 = int_to_ptr.hbm [resolvable:$true] %s1052
          %1058 = dma.vmem_to_hbm [thread:$0]  %s1051, 4096, %s1053, %s1012, 128, 128, 8
        $region56: #{tpu_custom_call.1} parent=47 // pred_fallthru
          _
        // Predicated region
        $region57: #{tpu_custom_call.1} parent=47 // pred_check
          %p1059 = pneg %p269
        $region58: #{tpu_custom_call.1} parent=47 // pred_check_branch
          %1061 = sbr.rel (%p1059) target = $region60
        $region59: #{tpu_custom_call.1} parent=47 // pred_region
          %s1062 = smul.u32 32, %s32
          %1064 = vsyncadd %s1017, 0
          %s1065 = smul.addr %s31, 32
          %s1066 = sadd.s32 %s1062, %s1065
          %s1067 = smul.addr %s1066, 8
          %s1068 = scalar_lea.hbm %s9, %s1067
          %s1069 = sshll.u32 %s1020, 4
          %s1070 = int_to_ptr.vmem [resolvable:$true] %s1069
          %s1071 = sshll.u32 %s1068, 4
          %s1072 = int_to_ptr.hbm [resolvable:$true] %s1071
          %1077 = dma.vmem_to_hbm [thread:$0]  %s1070, 4096, %s1072, %s1017, 128, 128, 8
        $region60: #{tpu_custom_call.1} parent=47 // pred_fallthru
          _
      $region48: #{tpu_custom_call.1} parent=5 // pred_fallthru
        _
      %p1078 = scmp.le.s32.totalorder 2, %s22
      // Predicated region
      $region61: #{tpu_custom_call.1} parent=5 // pred_check
        %p1079 = pneg %p1078
      $region62: #{tpu_custom_call.1} parent=5 // pred_check_branch
        %1081 = sbr.rel (%p1079) target = $region64
      $region63: #{tpu_custom_call.1} parent=5 // pred_region
        %s1082 = ssub.s32 %s22, 2
        // Predicated region
        $region65: #{tpu_custom_call.1} parent=63 // pred_check
          %p1083 = pneg %p219
        $region66: #{tpu_custom_call.1} parent=63 // pred_check_branch
          %1085 = sbr.rel (%p1083) target = $region68
        $region67: #{tpu_custom_call.1} parent=63 // pred_region
          %s1086 = sand.u32 %s204, 1
          %s1087 = scalar_lea.sflag [#allocation3], %s1086
          %s1088 = sand.u32 %s204, 1
          %s1089 = smul.addr %s1088, 256
          %s1090 = scalar_lea.vmem [#allocation2], %s1089
          %1092 = dma.done %s1087, 4096
        $region68: #{tpu_custom_call.1} parent=63 // pred_fallthru
          _
        // Predicated region
        $region69: #{tpu_custom_call.1} parent=63 // pred_check
          %p1093 = pneg %p247
        $region70: #{tpu_custom_call.1} parent=63 // pred_check_branch
          %1095 = sbr.rel (%p1093) target = $region72
        $region71: #{tpu_custom_call.1} parent=63 // pred_region
          %s1096 = sand.u32 %s28, 1
          %s1097 = scalar_lea.sflag [#allocation5], %s1096
          %s1098 = sand.u32 %s232, 1
          %s1099 = smul.addr %s1098, 256
          %s1100 = scalar_lea.vmem [#allocation4], %s1099
          %1102 = dma.done %s1097, 4096
        $region72: #{tpu_custom_call.1} parent=63 // pred_fallthru
          _
        // Predicated region
        $region73: #{tpu_custom_call.1} parent=63 // pred_check
          %p1103 = pneg %p275
        $region74: #{tpu_custom_call.1} parent=63 // pred_check_branch
          %1105 = sbr.rel (%p1103) target = $region76
        $region75: #{tpu_custom_call.1} parent=63 // pred_region
          %s1106 = sand.u32 %s28, 1
          %s1107 = scalar_lea.sflag [#allocation5], %s1106
          %s1108 = sand.u32 %s260, 1
          %s1109 = smul.addr %s1108, 256
          %s1110 = scalar_lea.vmem [#allocation6], %s1109
          %1112 = dma.done %s1107, 4096
        $region76: #{tpu_custom_call.1} parent=63 // pred_fallthru
          _
      $region64: #{tpu_custom_call.1} parent=5 // pred_fallthru
        _
    $region6: #{tpu_custom_call.1} parent=1 // loop_footer
      %s26 = sadd.s32 1, %s22
    $region7: #{tpu_custom_call.1} parent=1 // loop_footer_branch
      %21 = sbr.rel target = $region3
    $region8: #{tpu_custom_call.1} parent=1 // loop_exit
      _
    %1113 = vsyncpa [#allocation3], 1
    %s1114 = scalar_lea.sflag [#allocation3], 1
    %1115 = vsyncpa %s1114, 1
    %1116 = vsyncpa [#allocation5], 1
    %s1117 = scalar_lea.sflag [#allocation5], 1
    %1118 = vsyncpa %s1117, 1

</llo_original>
